<compile_context>
chip_gen: v7x
topology: tpu7x:2x2x1
jax: 0.10.0
libtpu: 0.0.40
codegen_flags: <defaults>
</compile_context>

<pallas_src>
import functools

import jax
import jax.numpy as jnp
from jax import lax
from jax.experimental import pallas as pl
from jax.experimental.pallas import tpu as pltpu

_LANE = 128
_SUBLANE = 8
_SLACK = 2 * 1024 * 1024  # VMEM headroom for compiler temps / semaphores
_MiB = 1024 * 1024


def _round_up(n, m):
    return (n + m - 1) // m * m


def _round_down(n, m):
    return max(m, (n // m) * m)


def _sublane_mult(itemsize):
    # Granularity of the L tile so the in-kernel (tb, tl, D)->(tb*tl, D)
    # collapse is layout-preserving (bf16 packs 16 rows per vreg, f32 packs 8).
    return 16 if itemsize == 2 else _SUBLANE


def _tpu_budgets():
    """Generation-aware (vmem_limit_bytes, per-x-buffer budget, prefer>=2 tiles)."""
    try:
        cap = int(pltpu.get_tpu_info().vmem_capacity_bytes)
    except Exception:
        cap = None
    if cap is None:
        # Unknown part: be conservative (safe on v7x's 64 MiB per-core VMEM).
        return 48 * _MiB, 8 * _MiB, False
    if cap <= 80 * _MiB:
        # v7x-like: 64 MiB per TensorCore, 2 TCs -> keep headroom and prefer
        # >=2 parallel batch tiles so dimension_semantics shards across cores.
        return min(48 * _MiB, int(cap * 0.75)), max(2 * _MiB, min(48 * _MiB, int(cap * 0.75)) // 6), True
    # v5e / v6e: 128 MiB physical VMEM -> bigger tiles, fewer grid steps.
    limit = min(100 * _MiB, int(cap * 0.78))
    return limit, limit // 5, False


# ----------------------------------------------------------------------------
# Kernels
# ----------------------------------------------------------------------------
def _logreg_kernel(x_ref, w_ref, b_ref, o_ref):
    # x:(TB, D)  w:(D, C_pad)  b:(1, C_pad)  o:(TB, C_pad)
    logits = jnp.dot(x_ref[...], w_ref[...], preferred_element_type=jnp.float32)
    o_ref[...] = jax.nn.sigmoid(logits + b_ref[...]).astype(o_ref.dtype)


def _logreg_esm_kernel(x_ref, w_ref, b_ref, o_ref, acc_ref, *, seq_len, inv_len):
    # Fused mean-over-L + linear + sigmoid via per-L-step matmul-accumulate.
    # x:(TB, TL, D) streamed over the L grid axis; w:(D, C_pad); b:(1, C_pad);
    # acc:(TB, C_pad) f32 running sum of per-position logits.
    li = pl.program_id(1)
    n_l = pl.num_programs(1)
    tb, tl, d = x_ref.shape
    c_pad = w_ref.shape[1]

    @pl.when(li == 0)
    def _():
        acc_ref[...] = jnp.zeros_like(acc_ref)

    # (tb, tl, D) -> (tb*tl, D): layout-preserving because tl is a multiple of
    # the sublane pack for the streamed dtype (see _sublane_mult).
    x2d = x_ref[...].reshape(tb * tl, d)
    logits = jnp.dot(x2d, w_ref[...], preferred_element_type=jnp.float32)
    logits3 = logits.reshape(tb, tl, c_pad)

    rem = seq_len % tl
    if rem != 0:
        # Partial last L block: only the first `rem` positions are valid
        # (the rest of the block is out-of-bounds garbage).
        @pl.when(li < n_l - 1)
        def _():
            acc_ref[...] += jnp.sum(logits3, axis=1)

        @pl.when(li == n_l - 1)
        def _():
            acc_ref[...] += jnp.sum(logits3[:, :rem, :], axis=1)
    else:
        acc_ref[...] += jnp.sum(logits3, axis=1)

    @pl.when(li == n_l - 1)
    def _():
        out = acc_ref[...] * inv_len + b_ref[...]
        o_ref[...] = jax.nn.sigmoid(out).astype(o_ref.dtype)


# ----------------------------------------------------------------------------
# Tile selection (byte-budget driven; no artificial row caps)
# ----------------------------------------------------------------------------
def _choose_tb_2d(b, d, c_pad, itemsize, x_budget, vmem_limit, prefer_multi):
    # TODO(synk): add a class (C) grid axis when 2*c_pad*D*itemsize is a large
    # fraction of the VMEM limit (many-class heads); not needed for this model.
    resident = 2 * d * c_pad * itemsize + 2 * c_pad * 4          # weight + bias
    row = 2 * d * itemsize + 2 * c_pad * itemsize                # x dbuf + out dbuf
    by_vmem = max(_SUBLANE, (vmem_limit - resident - _SLACK) // row)
    by_xbuf = max(_SUBLANE, x_budget // (d * itemsize))
    cap = min(by_vmem, by_xbuf)
    if b <= cap:
        if prefer_multi and b >= 2 * _SUBLANE:
            return _round_up(pl.cdiv(b, 2), _SUBLANE)            # >=2 tiles for 2 TCs
        return b                                                 # full-dim block
    return _round_down(cap, _SUBLANE)


def _choose_tb_tl(b, l, d, c_pad, itemsize, x_budget, vmem_limit, prefer_multi):
    m = _sublane_mult(itemsize)
    # L tile: fill the per-buffer budget assuming the minimum batch tile, but
    # never exceed L (so no oversized blocks); stay a multiple of m.
    per_lrow = _SUBLANE * (d * itemsize + c_pad * 4)
    tl = max(m, _round_down(x_budget // max(per_lrow, 1), m))
    tl = min(tl, _round_down(l, m))
    # Batch tile: fill VMEM given tl (x double-buffered, per-step logits
    # temporary, f32 accumulator, double-buffered output) + resident weight.
    resident = 2 * d * c_pad * itemsize + 2 * c_pad * 4
    row = 2 * tl * d * itemsize + tl * c_pad * 4 + c_pad * 4 + 2 * c_pad * itemsize
    by_vmem = max(_SUBLANE, (vmem_limit - resident - _SLACK) // row)
    by_xbuf = max(_SUBLANE, x_budget // (tl * d * itemsize))
    cap = min(by_vmem, by_xbuf)
    if b <= cap:
        if prefer_multi and b >= 2 * _SUBLANE:
            return _round_up(pl.cdiv(b, 2), _SUBLANE), tl
        return b, tl
    return _round_down(cap, _SUBLANE), tl


# ----------------------------------------------------------------------------
# Forward wrapper
# ----------------------------------------------------------------------------
def logistic_regression_forward(x, weight, bias, *, esm_mode=False, num_gene=1):
    """Reproduces LogisticRegression.forward.

    x:      (B, D), or (B, L, D) when esm_mode=True
    weight: (num_classes, D)  -- PyTorch nn.Linear layout
    bias:   (num_classes,)
    """
    x = jnp.asarray(x)
    if x.dtype != jnp.bfloat16:          # stream bf16 as-is; otherwise f32
        x = x.astype(jnp.float32)
    compute_dtype = x.dtype
    itemsize = jnp.dtype(compute_dtype).itemsize

    weight = jnp.asarray(weight).astype(compute_dtype)       # (C, D)
    bias = jnp.asarray(bias).astype(jnp.float32)
    C, D = weight.shape
    c_pad = _round_up(C, _LANE)
    # One-time weight prep: transpose to (D, C) so the in-kernel contraction is
    # canonical (no per-step relayout of the resident weight); pad classes to a
    # lane-dense multiple of 128 for unmasked output stores.
    w_t = weight.T
    bias_p = bias
    if c_pad != C:
        w_t = jnp.pad(w_t, ((0, 0), (0, c_pad - C)))
        bias_p = jnp.pad(bias_p, (0, c_pad - C))
    bias2d = bias_p.reshape(1, c_pad)

    vmem_limit, x_budget, prefer_multi = _tpu_budgets()

    fuse_esm = False
    if esm_mode:
        L = x.shape[1]
        # Fuse the L-mean only when a layout-clean L tile exists; tiny L is
        # handled in glue (negligible traffic).
        fuse_esm = (num_gene == 1) and (L >= _sublane_mult(itemsize))

    if esm_mode and not fuse_esm:
        # TODO(synk): esm L-mean combined with num_gene group-mean (or tiny L)
        # is done in JAX glue; only the pure esm path is fused in-kernel.
        x = x.mean(axis=1).astype(compute_dtype)

    if num_gene > 1:
        assert x.shape[0] % num_gene == 0, "batch must be divisible by num_gene"
        i, j = x.shape
        x = x.reshape(i // num_gene, num_gene, j).mean(axis=1).astype(compute_dtype)

    if fuse_esm:
        B, L, _ = x.shape
        tb, tl = _choose_tb_tl(B, L, D, c_pad, itemsize, x_budget, vmem_limit,
                               prefer_multi)
        grid = (pl.cdiv(B, tb), pl.cdiv(L, tl))
        # TODO(synk): optionally sweep pipeline_mode=pl.Buffered(3) on the x
        # stream; kept at the default double-buffer for robustness.
        out = pl.pallas_call(
            functools.partial(_logreg_esm_kernel, seq_len=L, inv_len=1.0 / float(L)),
            out_shape=jax.ShapeDtypeStruct((B, c_pad), compute_dtype),
            grid=grid,
            in_specs=[
                pl.BlockSpec((tb, tl, D), lambda i, l: (i, l, 0)),
                pl.BlockSpec((D, c_pad), lambda i, l: (0, 0)),
                pl.BlockSpec((1, c_pad), lambda i, l: (0, 0)),
            ],
            out_specs=pl.BlockSpec((tb, c_pad), lambda i, l: (i, 0)),
            scratch_shapes=[pltpu.VMEM((tb, c_pad), jnp.float32)],
            compiler_params=pltpu.CompilerParams(
                dimension_semantics=("parallel", "arbitrary"),
                vmem_limit_bytes=vmem_limit),
        )(x, w_t, bias2d)
        return out[:, :C] if c_pad != C else out

    # Plain (possibly group-meaned) 2-D path: batch-tiled, weight resident.
    B = x.shape[0]
    tb = _choose_tb_2d(B, D, c_pad, itemsize, x_budget, vmem_limit, prefer_multi)
    grid = (pl.cdiv(B, tb),)
    out = pl.pallas_call(
        _logreg_kernel,
        out_shape=jax.ShapeDtypeStruct((B, c_pad), compute_dtype),
        grid=grid,
        in_specs=[
            pl.BlockSpec((tb, D), lambda i: (i, 0)),
            pl.BlockSpec((D, c_pad), lambda i: (0, 0)),
            pl.BlockSpec((1, c_pad), lambda i: (0, 0)),
        ],
        out_specs=pl.BlockSpec((tb, c_pad), lambda i: (i, 0)),
        compiler_params=pltpu.CompilerParams(
            dimension_semantics=("parallel",),
            vmem_limit_bytes=vmem_limit),
    )(x, w_t, bias2d)
    return out[:, :C] if c_pad != C else out


# ----------------------------------------------------------------------------
# Demo / self-check
# ----------------------------------------------------------------------------
if __name__ == "__main__":
    key = jax.random.PRNGKey(0)
    k_x, k_xe, k_w, k_b = jax.random.split(key, 4)

    batch, seq, input_dim, num_classes = 8, 8, 32, 4

    bound = 1.0 / (input_dim ** 0.5)
    weight = jax.random.uniform(k_w, (num_classes, input_dim),
                                minval=-bound, maxval=bound, dtype=jnp.float32)
    bias = jax.random.uniform(k_b, (num_classes,),
                              minval=-bound, maxval=bound, dtype=jnp.float32)

    # Path 1: plain linear + sigmoid (esm_mode=False, num_gene=1).
    x = jax.random.normal(k_x, (batch, input_dim), dtype=jnp.float32)
    y1 = jax.block_until_ready(logistic_regression_forward(x, weight, bias))
    ref1 = jax.nn.sigmoid(x @ weight.T + bias)
    assert y1.shape == (batch, num_classes)
    assert jnp.allclose(y1, ref1, atol=1e-5, rtol=1e-5)

    # Path 2: esm_mode=True — mean over L fused as matmul-accumulate.
    xe = jax.random.normal(k_xe, (batch, seq, input_dim), dtype=jnp.float32)
    y2 = jax.block_until_ready(
        logistic_regression_forward(xe, weight, bias, esm_mode=True))
    ref2 = jax.nn.sigmoid(xe.mean(axis=1) @ weight.T + bias)
    assert y2.shape == (batch, num_classes)
    assert jnp.allclose(y2, ref2, atol=1e-5, rtol=1e-5)

    # Path 3: num_gene=2 — group mean in glue, then the tiled kernel.
    y3 = jax.block_until_ready(
        logistic_regression_forward(x, weight, bias, num_gene=2))
    xg = x.reshape(batch // 2, 2, input_dim).mean(axis=1)
    ref3 = jax.nn.sigmoid(xg @ weight.T + bias)
    assert y3.shape == (batch // 2, num_classes)
    assert jnp.allclose(y3, ref3, atol=1e-5, rtol=1e-5)

    print("KERNEL_OK")
</pallas_src>

<mosaic_0001>
module attributes {stable_mosaic.version = 11 : i64} {
  func.func @_logreg_kernel(%arg0: i32, %arg1: memref<8x32xf32, #tpu.memory_space<vmem>>, %arg2: memref<32x128xf32, #tpu.memory_space<vmem>>, %arg3: memref<1x128xf32, #tpu.memory_space<vmem>>, %arg4: memref<8x128xf32, #tpu.memory_space<vmem>>) attributes {dimension_semantics = [#tpu.dimension_semantics<parallel>], iteration_bounds = array<i64: 1>, scalar_prefetch = 0 : i64, scratch_operands = 0 : i64, tpu.core_type = #tpu.core_type<tc>, window_params = [{transform_indices = @transform_0, window_bounds = array<i64: 8, 32>}, {pipeline_mode = #tpu.pipeline_mode<synchronous>, transform_indices = @transform_1, window_bounds = array<i64: 32, 128>}, {pipeline_mode = #tpu.pipeline_mode<synchronous>, transform_indices = @transform_2, window_bounds = array<i64: 1, 128>}, {transform_indices = @transform_3, window_bounds = array<i64: 8, 128>}]} {
    %c0 = arith.constant 0 : index
    %c0_0 = arith.constant 0 : index
    %0 = vector.load %arg1[%c0, %c0_0] : memref<8x32xf32, #tpu.memory_space<vmem>>, vector<8x32xf32>
    %c0_1 = arith.constant 0 : index
    %c0_2 = arith.constant 0 : index
    %1 = vector.load %arg2[%c0_1, %c0_2] : memref<32x128xf32, #tpu.memory_space<vmem>>, vector<32x128xf32>
    %cst = arith.constant dense<0.000000e+00> : vector<8x128xf32>
    %2 = tpu.matmul %0, %1, %cst {dimension_numbers = #tpu.dot_dimension_numbers<[1], [0], [0], [1], [0, 0, 1, 1], [], []>} : vector<8x32xf32>, vector<32x128xf32>, vector<8x128xf32> -> vector<8x128xf32>
    %c0_3 = arith.constant 0 : index
    %c0_4 = arith.constant 0 : index
    %3 = vector.load %arg3[%c0_3, %c0_4] : memref<1x128xf32, #tpu.memory_space<vmem>>, vector<1x128xf32>
    %4 = vector.broadcast %3 : vector<1x128xf32> to vector<8x128xf32>
    %5 = arith.addf %2, %4 : vector<8x128xf32>
    %6 = arith.negf %5 : vector<8x128xf32>
    %7 = math.exp %6 : vector<8x128xf32>
    %cst_5 = arith.constant 1.000000e+00 : f32
    %8 = vector.broadcast %cst_5 : f32 to vector<8x128xf32>
    %9 = arith.addf %8, %7 : vector<8x128xf32>
    %10 = arith.divf %8, %9 : vector<8x128xf32>
    %c0_6 = arith.constant 0 : index
    %c0_7 = arith.constant 0 : index
    %11 = vector.load %arg4[%c0_6, %c0_7] : memref<8x128xf32, #tpu.memory_space<vmem>>, vector<8x128xf32>
    tpu.vector_store %arg4[%c0_6, %c0_7], %10 {strides = array<i32>} : memref<8x128xf32, #tpu.memory_space<vmem>>, vector<8x128xf32>,
    return
  }
  func.func @transform_0(%arg0: i32) -> (i32, i32) {
    %c0_i32 = arith.constant 0 : i32
    %c0_i32_0 = arith.constant 0 : i32
    return %arg0, %c0_i32 : i32, i32
  }
  func.func @transform_1(%arg0: i32) -> (i32, i32) {
    %c0_i32 = arith.constant 0 : i32
    %c0_i32_0 = arith.constant 0 : i32
    %c0_i32_1 = arith.constant 0 : i32
    return %c0_i32, %c0_i32_0 : i32, i32
  }
  func.func @transform_2(%arg0: i32) -> (i32, i32) {
    %c0_i32 = arith.constant 0 : i32
    %c0_i32_0 = arith.constant 0 : i32
    %c0_i32_1 = arith.constant 0 : i32
    return %c0_i32, %c0_i32_0 : i32, i32
  }
  func.func @transform_3(%arg0: i32) -> (i32, i32) {
    %c0_i32 = arith.constant 0 : i32
    %c0_i32_0 = arith.constant 0 : i32
    return %arg0, %c0_i32 : i32, i32
  }
}

</mosaic_0001>

<llo_original>
// kernel: tpu_custom_call.1
$region0: #{tpu_custom_call.1}
  #allocation0 [shape = 'u32[]', space=smem, size = 0x4, offset = 0x4, fixed_abs, tag = 'smem constant byte address 0x4 - core index']
  #allocation1 [shape = 'u32[144,128]{1,0:T(1,128)}', space=vmem, size = 0x12000, scoped, tag = 'internal scratch']
  %s0 = inlined_call_operand.hbm [shape: f32[8,32], index: 0, kind: input, shape index: {}]
  %s1 = inlined_call_operand.hbm [shape: f32[32,128], index: 1, kind: input, shape index: {}]
  %s2 = inlined_call_operand.vmem [shape: f32[1,128], index: 2, kind: input, shape index: {}]
  %s3 = inlined_call_operand.hbm [shape: f32[8,128], index: 3, kind: output, shape index: {}]
  %s4 = sld [smem:[#allocation0]]
  $region30: #{tpu_custom_call.1} parent=0
    _
  %s6 = ssub.s32 1, %s4
  %s7 = scalar_select 0, %s6, %s4
  $region1: #{tpu_custom_call.1} parent=0
    #allocation2 [shape = 'u8[4096]{0}', space=vmem, size = 0x1000, scoped, tag = 'input window, operand 0, single buffered']
    #allocation3 [shape = 's32[1]{0}', space=sflag, size = 0x4, scoped, tag = 'scoped memory for tpu_custom_call.1']
    #allocation4 [shape = 's32[1]{0}', space=sflag, size = 0x4, scoped, tag = 'scoped memory for tpu_custom_call.1']
    #allocation5 [shape = 'u8[16384]{0}', space=vmem, size = 0x4000, scoped, tag = 'input window, operand 1, single buffered']
    #allocation6 [shape = 's32[1]{0}', space=sflag, size = 0x4, scoped, tag = 'scoped memory for tpu_custom_call.1']
    #allocation7 [shape = 'u8[4096]{0}', space=vmem, size = 0x1000, scoped, tag = 'output window, operand 0, single buffered']
    %8 = vsyncpa [#allocation3], 0
    %9 = vsyncpa [#allocation6], 0
    %10 = vsyncpa [#allocation4], 0
    // Predicated region
    $region2: #{tpu_custom_call.1} parent=1 // pred_check
      _
    $region3: #{tpu_custom_call.1} parent=1 // pred_check_branch
      %12 = sbr.rel (0) target = $region5
    $region4: #{tpu_custom_call.1} parent=1 // pred_region
      %s14 = ssub.s32 128, 128
      %15 = vsyncadd [#allocation3], %s14
      %s17 = sshll.u32 [#allocation2], 4
      %s18 = int_to_ptr.vmem [resolvable:$true] %s17
      %20 = dma.hbm_to_vmem [thread:$0]  %s0, 128, %s18, [#allocation3]
    $region5: #{tpu_custom_call.1} parent=1 // pred_fallthru
      _
    // Predicated region
    $region6: #{tpu_custom_call.1} parent=1 // pred_check
      _
    $region7: #{tpu_custom_call.1} parent=1 // pred_check_branch
      %22 = sbr.rel (0) target = $region9
    $region8: #{tpu_custom_call.1} parent=1 // pred_region
      %s24 = ssub.s32 512, 512
      %25 = vsyncadd [#allocation6], %s24
      %s26 = sshll.u32 [#allocation5], 4
      %s27 = int_to_ptr.vmem [resolvable:$true] %s26
      %32 = dma.hbm_to_vmem [thread:$0]  %s1, 512, %s27, [#allocation6], 128, 128, 8
    $region9: #{tpu_custom_call.1} parent=1 // pred_fallthru
      _
    // Predicated region
    $region10: #{tpu_custom_call.1} parent=1 // pred_check
      _
    $region11: #{tpu_custom_call.1} parent=1 // pred_check_branch
      %34 = sbr.rel (0) target = $region13
    $region12: #{tpu_custom_call.1} parent=1 // pred_region
      _
    $region13: #{tpu_custom_call.1} parent=1 // pred_fallthru
      _
    // Predicated region
    $region14: #{tpu_custom_call.1} parent=1 // pred_check
      _
    $region15: #{tpu_custom_call.1} parent=1 // pred_check_branch
      %36 = sbr.rel (0) target = $region17
    $region16: #{tpu_custom_call.1} parent=1 // pred_region
      %37 = dma.done [#allocation3], 128
    $region17: #{tpu_custom_call.1} parent=1 // pred_fallthru
      _
    // Predicated region
    $region18: #{tpu_custom_call.1} parent=1 // pred_check
      _
    $region19: #{tpu_custom_call.1} parent=1 // pred_check_branch
      %39 = sbr.rel (0) target = $region21
    $region20: #{tpu_custom_call.1} parent=1 // pred_region
      %40 = dma.done [#allocation6], 512
    $region21: #{tpu_custom_call.1} parent=1 // pred_fallthru
      _
    %v41 = vld [vmem:[#allocation2] sm:$0xff]
    %v42 = vld [vmem:[#allocation5] sm:$0xff]
    %v43 = vld [vmem:[#allocation5 + $0x8] sm:$0xff]
    %v44 = vld [vmem:[#allocation5 + $0x10] sm:$0xff]
    %v45 = vld [vmem:[#allocation5 + $0x18] sm:$0xff]
    %v46 = vld [vmem:[%s2] sm:$0x1]
    %v48 = vlaneseq
    %v49 = vshrl.u32 %v48, 7
    %v50 = vsub.s32 0, %v49
    %v51 = vrot.slane %v46, %v50
    %vm53 = vcmask 261120
    %v55 = vsel %vm53, %v41, 0
    %57 = vmatprep.subr.mxu0 0.0
    %58 = vmatpush1.msra.mxu0 %v42
    %59 = vmatprep.subr.mxu0 0.0
    %60 = vmatpush1.msra.mxu0 %v43
    %61 = vmatprep.subr.mxu0 0.0
    %62 = vmatpush1.msra.mxu0 %v44
    %63 = vmatprep.subr.mxu0 0.0
    %64 = vmatpush1.msra.mxu0 %v45
    %65 = vmatprep.subr.mxu0 0.0
    %66 = vmatpush1.msra.mxu0 0.0
    %67 = vmatprep.subr.mxu0 0.0
    %68 = vmatpush1.msra.mxu0 0.0
    %69 = vmatprep.subr.mxu0 0.0
    %70 = vmatpush1.msra.mxu0 0.0
    %71 = vmatprep.subr.mxu0 0.0
    %72 = vmatpush1.msra.mxu0 0.0
    %73 = vmatprep.subr.mxu0 0.0
    %74 = vmatpush1.msra.mxu0 0.0
    %75 = vmatprep.subr.mxu0 0.0
    %76 = vmatpush1.msra.mxu0 0.0
    %77 = vmatprep.subr.mxu0 0.0
    %78 = vmatpush1.msra.mxu0 0.0
    %79 = vmatprep.subr.mxu0 0.0
    %80 = vmatpush1.msra.mxu0 0.0
    %81 = vmatprep.subr.mxu0 0.0
    %82 = vmatpush1.msra.mxu0 0.0
    %83 = vmatprep.subr.mxu0 0.0
    %84 = vmatpush1.msra.mxu0 0.0
    %85 = vmatprep.subr.mxu0 0.0
    %86 = vmatpush1.msra.mxu0 0.0
    %87 = vmatprep.subr.mxu0 0.0
    %88 = vmatpush1.msra.mxu0 0.0
    %89 = vmatprep.subr.mxu0 0.0
    %90 = vmatpush1.msra.mxu0 0.0
    %91 = vmatprep.subr.mxu0 0.0
    %92 = vmatpush1.msra.mxu0 0.0
    %93 = vmatprep.subr.mxu0 0.0
    %94 = vmatpush1.msra.mxu0 0.0
    %95 = vmatprep.subr.mxu0 0.0
    %96 = vmatpush1.msra.mxu0 0.0
    %97 = vmatprep.subr.mxu0 0.0
    %98 = vmatpush1.msra.mxu0 0.0
    %99 = vmatprep.subr.mxu0 0.0
    %100 = vmatpush1.msra.mxu0 0.0
    %101 = vmatprep.subr.mxu0 0.0
    %102 = vmatpush1.msra.mxu0 0.0
    %103 = vmatprep.subr.mxu0 0.0
    %104 = vmatpush1.msra.mxu0 0.0
    %105 = vmatprep.subr.mxu0 0.0
    %106 = vmatpush1.msra.mxu0 0.0
    %107 = vmatprep.subr.mxu0 0.0
    %108 = vmatpush1.msra.mxu0 0.0
    %109 = vmatprep.subr.mxu0 0.0
    %110 = vmatpush1.msra.mxu0 0.0
    %111 = vmatprep.subr.mxu0 0.0
    %112 = vmatpush1.msra.mxu0 0.0
    %113 = vmatprep.subr.mxu0 0.0
    %114 = vmatpush1.msra.mxu0 0.0
    %115 = vmatprep.subr.mxu0 0.0
    %116 = vmatpush1.msra.mxu0 0.0
    %117 = vmatprep.subr.mxu0 0.0
    %118 = vmatpush1.msra.mxu0 0.0
    %119 = vmatprep.subr.mxu0 0.0
    %120 = vmatpush1.msra.mxu0 0.0
    %121 = vmatprep.mubr.f32.mxu0 0.0
    %122 = vmatmul.mubr.f32.gmra.mrb[0].mxu0 %v55
    %v123 = vpop.f32.mrb[0].mxu0
    %v124 = vadd.f32 %v51, %v123
    %v125 = vpop.f32.mrb[0].mxu0
    %126 = vdwg.mxu0
    %v127 = vxor.u32 %v124, 2147483648
    %v128 = vmul.f32 %v127, 1.442695
    %v129 = vpow.pop %v128
    %v130 = vadd.f32 %v129, 1.0
    %v131 = vrcp.pop %v130
    %v132 = vmul.f32 1.0, %v131
    %133 = vst [vmem:[#allocation7] sm:$0xff] %v132
    // Predicated region
    $region22: #{tpu_custom_call.1} parent=1 // pred_check
      _
    $region23: #{tpu_custom_call.1} parent=1 // pred_check_branch
      %135 = sbr.rel (0) target = $region25
    $region24: #{tpu_custom_call.1} parent=1 // pred_region
      %s137 = ssub.s32 128, 128
      %138 = vsyncadd [#allocation4], %s137
      %s140 = sshll.u32 [#allocation7], 4
      %s141 = int_to_ptr.vmem [resolvable:$true] %s140
      %143 = dma.vmem_to_hbm [thread:$0]  %s141, 128, %s3, [#allocation4]
    $region25: #{tpu_custom_call.1} parent=1 // pred_fallthru
      _
    // Predicated region
    $region26: #{tpu_custom_call.1} parent=1 // pred_check
      _
    $region27: #{tpu_custom_call.1} parent=1 // pred_check_branch
      %145 = sbr.rel (0) target = $region29
    $region28: #{tpu_custom_call.1} parent=1 // pred_region
      %146 = dma.done [#allocation4], 128
    $region29: #{tpu_custom_call.1} parent=1 // pred_fallthru
      _
    %147 = vsyncpa [#allocation3], 1
    %148 = vsyncpa [#allocation6], 1
    %149 = vsyncpa [#allocation4], 1

</llo_original>
